<compile_context>
chip_gen: v7x
topology: tpu7x:2x2x1
jax: 0.10.0
libtpu: 0.0.40
codegen_flags: <defaults>
</compile_context>

<pallas_src>
import functools

import jax
import jax.numpy as jnp
from jax.experimental import pallas as pl
from jax.experimental.pallas import tpu as pltpu


def _round_up(n, m):
    return (n + m - 1) // m * m


def _cdiv(a, b):
    return (a + b - 1) // b


def _fused_kernel(x_ref, w1_ref, w2_ref, w3_ref, b_ref, out_ref, *, h2, out_w):
    """h = tanh(x@W1 + b1); h = tanh(h@W2 + b2); out = h@W3 + b3."""
    x = x_ref[...]                                            # (TB, obs_dim) f32
    h = jnp.tanh(
        jnp.dot(x, w1_ref[...], preferred_element_type=jnp.float32)
        + b_ref[0:1, :h2]
    )
    h = jnp.tanh(
        jnp.dot(h, w2_ref[...], preferred_element_type=jnp.float32)
        + b_ref[1:2, :h2]
    )
    out_ref[...] = (
        jnp.dot(h, w3_ref[...], preferred_element_type=jnp.float32)
        + b_ref[2:3, :out_w]
    )                                                         # (TB, out_w) lane-dense


def pack_params(params):
    """Pack per-layer actor/critic weights into fused, lane-dense f32 tensors.

    Done once at init time, not per forward call.
    """
    aw1, ab1 = params["aw1"], params["ab1"]
    aw2, ab2 = params["aw2"], params["ab2"]
    aw3, ab3 = params["aw3"], params["ab3"]
    cw1, cb1 = params["cw1"], params["cb1"]
    cw2, cb2 = params["cw2"], params["cb2"]
    cw3, cb3 = params["cw3"], params["cb3"]

    obs_dim, hidden = aw1.shape
    num_buttons = aw3.shape[1]
    h2 = _round_up(2 * hidden, 128)           # fused hidden width (lane-dense)
    out_w = _round_up(num_buttons + 1, 128)   # fused output width (lane-dense)
    slab_w = max(h2, out_w)

    w1 = jnp.zeros((obs_dim, h2), jnp.float32)
    w1 = w1.at[:, :hidden].set(aw1).at[:, hidden:2 * hidden].set(cw1)

    w2 = jnp.zeros((h2, h2), jnp.float32)
    w2 = (w2.at[:hidden, :hidden].set(aw2)
             .at[hidden:2 * hidden, hidden:2 * hidden].set(cw2))

    w3 = jnp.zeros((h2, out_w), jnp.float32)
    w3 = (w3.at[:hidden, :num_buttons].set(aw3)
             .at[hidden:2 * hidden, num_buttons].set(cw3[:, 0]))

    # Single (8, W) bias slab: row 0 -> b1, row 1 -> b2, row 2 -> b3, rest zero.
    b = jnp.zeros((8, slab_w), jnp.float32)
    b = b.at[0, :hidden].set(ab1[0]).at[0, hidden:2 * hidden].set(cb1[0])
    b = b.at[1, :hidden].set(ab2[0]).at[1, hidden:2 * hidden].set(cb2[0])
    b = b.at[2, :num_buttons].set(ab3[0]).at[2, num_buttons].set(cb3[0, 0])

    return dict(w1=w1, w2=w2, w3=w3, b=b,
                num_buttons=num_buttons, h2=h2, out_w=out_w)


# VMEM sizing: 24 MiB working-set target leaves headroom under v7x's 32 MiB
# scoped default (64 MiB physical); v5e/v6e (128 MiB physical) have 2x slack.
_VMEM_BUDGET = 24 * 1024 * 1024
_VMEM_LIMIT = 32 * 1024 * 1024
_MAX_TB = 512


def _pick_batch_tile(B, obs_dim, out_w, weight_bytes):
    """Pick (tb, grid_n): >=2 grid steps for v7x megacore, VMEM-budgeted tb,
    and minimal batch padding (grid_n*tb exceeds round_up(B,8) by < tb)."""
    b_pad = _round_up(max(B, 1), 8)
    # Conservatively assume weights may be double-buffered (fallback path),
    # plus double-buffered x and out tiles.
    per_row = 2 * 4 * (obs_dim + out_w)
    avail = _VMEM_BUDGET - 2 * weight_bytes
    vmem_tb = (avail // per_row) // 8 * 8 if avail > per_row * 8 else 8
    max_tb = max(8, min(_MAX_TB, vmem_tb))
    if b_pad < 16:
        tb = b_pad                           # single tiny tile; grid of 1
    else:
        # Split rows ~in half so v7x's second TensorCore does work; the cap
        # keeps tb >= 128 for large B (feeds the MXU on single-TC v5e/v6e).
        tb = max(8, min(max_tb, _round_up(_cdiv(b_pad, 2), 8)))
    grid_n = _cdiv(b_pad, tb)
    return tb, grid_n


def actor_critic_forward(x, packed):
    """x: any shape with leading batch dim; flattened to (B, obs_dim)."""
    x = x.astype(jnp.float32)
    x = x.reshape(x.shape[0], -1)
    B, obs_dim = x.shape

    w1, w2, w3, b = packed["w1"], packed["w2"], packed["w3"], packed["b"]
    num_buttons = packed["num_buttons"]
    h2, out_w = packed["h2"], packed["out_w"]

    weight_bytes = 4 * int(w1.size + w2.size + w3.size + b.size)
    tb, grid_n = _pick_batch_tile(B, obs_dim, out_w, weight_bytes)
    total = grid_n * tb                      # minimal padding (< tb extra rows)
    if total != B:
        x = jnp.pad(x, ((0, total - B), (0, 0)))

    kernel = functools.partial(_fused_kernel, h2=h2, out_w=out_w)
    cost = pl.CostEstimate(
        flops=int(2 * total * (obs_dim * h2 + h2 * h2 + h2 * out_w)),
        transcendentals=int(2 * total * h2),
        bytes_accessed=int(4 * total * (obs_dim + out_w) + weight_bytes),
    )

    def run(single_buffer_weights):
        def resident(shape):
            # Block index never changes -> a second pipeline buffer is waste.
            if single_buffer_weights:
                return pl.BlockSpec(shape, lambda i: (0, 0),
                                    pipeline_mode=pl.Buffered(1))
            return pl.BlockSpec(shape, lambda i: (0, 0))

        return pl.pallas_call(
            kernel,
            out_shape=jax.ShapeDtypeStruct((total, out_w), jnp.float32),
            grid=(grid_n,),
            in_specs=[
                pl.BlockSpec((tb, obs_dim), lambda i: (i, 0)),   # x row tile
                resident(w1.shape),                               # packed W1
                resident(w2.shape),                               # packed W2
                resident(w3.shape),                               # packed W3
                resident(b.shape),                                # bias slab
            ],
            out_specs=pl.BlockSpec((tb, out_w), lambda i: (i, 0)),  # lane-dense
            compiler_params=pltpu.CompilerParams(
                dimension_semantics=("parallel",),
                vmem_limit_bytes=_VMEM_LIMIT),
            cost_estimate=cost,
        )(x, w1, w2, w3, b)

    try:
        out = run(True)      # single-buffer the grid-invariant weight operands
    except Exception:        # jax build without pipeline_mode / Buffered(1)
        out = run(False)

    logits = out[:B, :num_buttons]
    values = out[:B, num_buttons]
    return logits, values


def init_params(key, obs_dim, num_buttons, hidden_dim=64):
    """Mirror PyTorch nn.Linear default init (U[-1/sqrt(in), 1/sqrt(in)]).
    Weights stored as (in_features, out_features); biases as (1, out_features)."""
    def linear(k, fan_in, fan_out):
        kw, kb = jax.random.split(k)
        bound = 1.0 / jnp.sqrt(fan_in)
        w = jax.random.uniform(kw, (fan_in, fan_out), jnp.float32, -bound, bound)
        b = jax.random.uniform(kb, (1, fan_out), jnp.float32, -bound, bound)
        return w, b

    keys = jax.random.split(key, 6)
    aw1, ab1 = linear(keys[0], obs_dim, hidden_dim)
    aw2, ab2 = linear(keys[1], hidden_dim, hidden_dim)
    aw3, ab3 = linear(keys[2], hidden_dim, num_buttons)
    cw1, cb1 = linear(keys[3], obs_dim, hidden_dim)
    cw2, cb2 = linear(keys[4], hidden_dim, hidden_dim)
    cw3, cb3 = linear(keys[5], hidden_dim, 1)
    return dict(
        aw1=aw1, ab1=ab1, aw2=aw2, ab2=ab2, aw3=aw3, ab3=ab3,
        cw1=cw1, cb1=cb1, cw2=cw2, cb2=cb2, cw3=cw3, cb3=cb3,
    )


if __name__ == "__main__":
    key = jax.random.PRNGKey(0)
    k_obs, k_param = jax.random.split(key)

    # Small shapes: batch=2, obs given as (2, 4, 8) -> flattened obs_dim=32.
    batch, obs_dim, num_buttons, hidden_dim = 2, 32, 8, 64
    x = jax.random.normal(k_obs, (batch, 4, 8), dtype=jnp.float32)

    params = init_params(k_param, obs_dim, num_buttons, hidden_dim)
    packed = pack_params(params)

    logits, values = actor_critic_forward(x, packed)
    jax.block_until_ready((logits, values))

    # Reference check in plain (unfused) JAX — same math as the PyTorch module.
    xf = x.reshape(batch, -1).astype(jnp.float32)
    ha = jnp.tanh(xf @ params["aw1"] + params["ab1"])
    ha = jnp.tanh(ha @ params["aw2"] + params["ab2"])
    ref_logits = ha @ params["aw3"] + params["ab3"]
    hc = jnp.tanh(xf @ params["cw1"] + params["cb1"])
    hc = jnp.tanh(hc @ params["cw2"] + params["cb2"])
    ref_values = (hc @ params["cw3"] + params["cb3"]).squeeze(-1)

    assert logits.shape == (batch, num_buttons)
    assert values.shape == (batch,)
    assert jnp.allclose(logits, ref_logits, atol=1e-5, rtol=1e-5)
    assert jnp.allclose(values, ref_values, atol=1e-5, rtol=1e-5)

    # Exercise the multi-tile path (grid > 1, partial last tile) as well.
    big_batch = 136                      # -> b_pad=136, tb=72, grid=2
    xb = jax.random.normal(jax.random.PRNGKey(1), (big_batch, 4, 8), jnp.float32)
    lb, vb = actor_critic_forward(xb, packed)
    jax.block_until_ready((lb, vb))
    xbf = xb.reshape(big_batch, -1)
    hb = jnp.tanh(xbf @ params["aw1"] + params["ab1"])
    hb = jnp.tanh(hb @ params["aw2"] + params["ab2"])
    assert jnp.allclose(lb, hb @ params["aw3"] + params["ab3"], atol=1e-5, rtol=1e-5)

    # TODO(synk): get_actions() Bernoulli sampling / log_prob is host-side
    # distribution logic, intentionally left outside the kernel.
    print("KERNEL_OK")
</pallas_src>

<mosaic_0001>
module attributes {stable_mosaic.version = 11 : i64} {
  func.func @_fused_kernel(%arg0: i32, %arg1: memref<8x32xf32, #tpu.memory_space<vmem>>, %arg2: memref<32x128xf32, #tpu.memory_space<vmem>>, %arg3: memref<128x128xf32, #tpu.memory_space<vmem>>, %arg4: memref<128x128xf32, #tpu.memory_space<vmem>>, %arg5: memref<8x128xf32, #tpu.memory_space<vmem>>, %arg6: memref<8x128xf32, #tpu.memory_space<vmem>>) attributes {dimension_semantics = [#tpu.dimension_semantics<parallel>], iteration_bounds = array<i64: 1>, scalar_prefetch = 0 : i64, scratch_operands = 0 : i64, tpu.core_type = #tpu.core_type<tc>, window_params = [{transform_indices = @transform_0, window_bounds = array<i64: 8, 32>}, {pipeline_mode = #tpu.pipeline_mode<synchronous>, transform_indices = @transform_1, window_bounds = array<i64: 32, 128>}, {pipeline_mode = #tpu.pipeline_mode<synchronous>, transform_indices = @transform_2, window_bounds = array<i64: 128, 128>}, {pipeline_mode = #tpu.pipeline_mode<synchronous>, transform_indices = @transform_3, window_bounds = array<i64: 128, 128>}, {pipeline_mode = #tpu.pipeline_mode<synchronous>, transform_indices = @transform_4, window_bounds = array<i64: 8, 128>}, {transform_indices = @transform_5, window_bounds = array<i64: 8, 128>}]} {
    %c0 = arith.constant 0 : index
    %c0_0 = arith.constant 0 : index
    %0 = vector.load %arg1[%c0, %c0_0] : memref<8x32xf32, #tpu.memory_space<vmem>>, vector<8x32xf32>
    %c0_1 = arith.constant 0 : index
    %c0_2 = arith.constant 0 : index
    %1 = vector.load %arg2[%c0_1, %c0_2] : memref<32x128xf32, #tpu.memory_space<vmem>>, vector<32x128xf32>
    %cst = arith.constant dense<0.000000e+00> : vector<8x128xf32>
    %2 = tpu.matmul %0, %1, %cst {dimension_numbers = #tpu.dot_dimension_numbers<[1], [0], [0], [1], [0, 0, 1, 1], [], []>} : vector<8x32xf32>, vector<32x128xf32>, vector<8x128xf32> -> vector<8x128xf32>
    %c0_3 = arith.constant 0 : index
    %c0_4 = arith.constant 0 : index
    %3 = vector.load %arg5[%c0_3, %c0_4] : memref<8x128xf32, #tpu.memory_space<vmem>>, vector<1x128xf32>
    %4 = vector.broadcast %3 : vector<1x128xf32> to vector<8x128xf32>
    %5 = arith.addf %2, %4 : vector<8x128xf32>
    %6 = math.tanh %5 : vector<8x128xf32>
    %c0_5 = arith.constant 0 : index
    %c0_6 = arith.constant 0 : index
    %7 = vector.load %arg3[%c0_5, %c0_6] : memref<128x128xf32, #tpu.memory_space<vmem>>, vector<128x128xf32>
    %cst_7 = arith.constant dense<0.000000e+00> : vector<8x128xf32>
    %8 = tpu.matmul %6, %7, %cst_7 {dimension_numbers = #tpu.dot_dimension_numbers<[1], [0], [0], [1], [0, 0, 1, 1], [], []>} : vector<8x128xf32>, vector<128x128xf32>, vector<8x128xf32> -> vector<8x128xf32>
    %c1 = arith.constant 1 : index
    %c0_8 = arith.constant 0 : index
    %9 = vector.load %arg5[%c1, %c0_8] : memref<8x128xf32, #tpu.memory_space<vmem>>, vector<1x128xf32>
    %10 = vector.broadcast %9 : vector<1x128xf32> to vector<8x128xf32>
    %11 = arith.addf %8, %10 : vector<8x128xf32>
    %12 = math.tanh %11 : vector<8x128xf32>
    %c0_9 = arith.constant 0 : index
    %c0_10 = arith.constant 0 : index
    %13 = vector.load %arg4[%c0_9, %c0_10] : memref<128x128xf32, #tpu.memory_space<vmem>>, vector<128x128xf32>
    %cst_11 = arith.constant dense<0.000000e+00> : vector<8x128xf32>
    %14 = tpu.matmul %12, %13, %cst_11 {dimension_numbers = #tpu.dot_dimension_numbers<[1], [0], [0], [1], [0, 0, 1, 1], [], []>} : vector<8x128xf32>, vector<128x128xf32>, vector<8x128xf32> -> vector<8x128xf32>
    %c2 = arith.constant 2 : index
    %c0_12 = arith.constant 0 : index
    %15 = vector.load %arg5[%c2, %c0_12] : memref<8x128xf32, #tpu.memory_space<vmem>>, vector<1x128xf32>
    %16 = vector.broadcast %15 : vector<1x128xf32> to vector<8x128xf32>
    %17 = arith.addf %14, %16 : vector<8x128xf32>
    %c0_13 = arith.constant 0 : index
    %c0_14 = arith.constant 0 : index
    %18 = vector.load %arg6[%c0_13, %c0_14] : memref<8x128xf32, #tpu.memory_space<vmem>>, vector<8x128xf32>
    tpu.vector_store %arg6[%c0_13, %c0_14], %17 {strides = array<i32>} : memref<8x128xf32, #tpu.memory_space<vmem>>, vector<8x128xf32>,
    return
  }
  func.func @transform_0(%arg0: i32) -> (i32, i32) {
    %c0_i32 = arith.constant 0 : i32
    %c0_i32_0 = arith.constant 0 : i32
    return %arg0, %c0_i32 : i32, i32
  }
  func.func @transform_1(%arg0: i32) -> (i32, i32) {
    %c0_i32 = arith.constant 0 : i32
    %c0_i32_0 = arith.constant 0 : i32
    %c0_i32_1 = arith.constant 0 : i32
    return %c0_i32, %c0_i32_0 : i32, i32
  }
  func.func @transform_2(%arg0: i32) -> (i32, i32) {
    %c0_i32 = arith.constant 0 : i32
    %c0_i32_0 = arith.constant 0 : i32
    %c0_i32_1 = arith.constant 0 : i32
    return %c0_i32, %c0_i32_0 : i32, i32
  }
  func.func @transform_3(%arg0: i32) -> (i32, i32) {
    %c0_i32 = arith.constant 0 : i32
    %c0_i32_0 = arith.constant 0 : i32
    %c0_i32_1 = arith.constant 0 : i32
    return %c0_i32, %c0_i32_0 : i32, i32
  }
  func.func @transform_4(%arg0: i32) -> (i32, i32) {
    %c0_i32 = arith.constant 0 : i32
    %c0_i32_0 = arith.constant 0 : i32
    %c0_i32_1 = arith.constant 0 : i32
    return %c0_i32, %c0_i32_0 : i32, i32
  }
  func.func @transform_5(%arg0: i32) -> (i32, i32) {
    %c0_i32 = arith.constant 0 : i32
    %c0_i32_0 = arith.constant 0 : i32
    return %arg0, %c0_i32 : i32, i32
  }
}

module attributes {stable_mosaic.version = 11 : i64} {
  func.func @_fused_kernel(%arg0: i32, %arg1: memref<8x32xf32, #tpu.memory_space<vmem>>, %arg2: memref<32x128xf32, #tpu.memory_space<vmem>>, %arg3: memref<128x128xf32, #tpu.memory_space<vmem>>, %arg4: memref<128x128xf32, #tpu.memory_space<vmem>>, %arg5: memref<8x128xf32, #tpu.memory_space<vmem>>, %arg6: memref<8x128xf32, #tpu.memory_space<vmem>>) attributes {dimension_semantics = [#tpu.dimension_semantics<parallel>], iteration_bounds = array<i64: 1>, scalar_prefetch = 0 : i64, scratch_operands = 0 : i64, tpu.core_type = #tpu.core_type<tc>, window_params = [{transform_indices = @transform_0, window_bounds = array<i64: 8, 32>}, {pipeline_mode = #tpu.pipeline_mode<synchronous>, transform_indices = @transform_1, window_bounds = array<i64: 32, 128>}, {pipeline_mode = #tpu.pipeline_mode<synchronous>, transform_indices = @transform_2, window_bounds = array<i64: 128, 128>}, {pipeline_mode = #tpu.pipeline_mode<synchronous>, transform_indices = @transform_3, window_bounds = array<i64: 128, 128>}, {pipeline_mode = #tpu.pipeline_mode<synchronous>, transform_indices = @transform_4, window_bounds = array<i64: 8, 128>}, {transform_indices = @transform_5, window_bounds = array<i64: 8, 128>}]} {
    %c0 = arith.constant 0 : index
    %c0_0 = arith.constant 0 : index
    %0 = vector.load %arg1[%c0, %c0_0] : memref<8x32xf32, #tpu.memory_space<vmem>>, vector<8x32xf32>
    %c0_1 = arith.constant 0 : index
    %c0_2 = arith.constant 0 : index
    %1 = vector.load %arg2[%c0_1, %c0_2] : memref<32x128xf32, #tpu.memory_space<vmem>>, vector<32x128xf32>
    %cst = arith.constant dense<0.000000e+00> : vector<8x128xf32>
    %2 = tpu.matmul %0, %1, %cst {dimension_numbers = #tpu.dot_dimension_numbers<[1], [0], [0], [1], [0, 0, 1, 1], [], []>} : vector<8x32xf32>, vector<32x128xf32>, vector<8x128xf32> -> vector<8x128xf32>
    %c0_3 = arith.constant 0 : index
    %c0_4 = arith.constant 0 : index
    %3 = vector.load %arg5[%c0_3, %c0_4] : memref<8x128xf32, #tpu.memory_space<vmem>>, vector<1x128xf32>
    %4 = vector.broadcast %3 : vector<1x128xf32> to vector<8x128xf32>
    %5 = arith.addf %2, %4 : vector<8x128xf32>
    %6 = math.tanh %5 : vector<8x128xf32>
    %c0_5 = arith.constant 0 : index
    %c0_6 = arith.constant 0 : index
    %7 = vector.load %arg3[%c0_5, %c0_6] : memref<128x128xf32, #tpu.memory_space<vmem>>, vector<128x128xf32>
    %cst_7 = arith.constant dense<0.000000e+00> : vector<8x128xf32>
    %8 = tpu.matmul %6, %7, %cst_7 {dimension_numbers = #tpu.dot_dimension_numbers<[1], [0], [0], [1], [0, 0, 1, 1], [], []>} : vector<8x128xf32>, vector<128x128xf32>, vector<8x128xf32> -> vector<8x128xf32>
    %c1 = arith.constant 1 : index
    %c0_8 = arith.constant 0 : index
    %9 = vector.load %arg5[%c1, %c0_8] : memref<8x128xf32, #tpu.memory_space<vmem>>, vector<1x128xf32>
    %10 = vector.broadcast %9 : vector<1x128xf32> to vector<8x128xf32>
    %11 = arith.addf %8, %10 : vector<8x128xf32>
    %12 = math.tanh %11 : vector<8x128xf32>
    %c0_9 = arith.constant 0 : index
    %c0_10 = arith.constant 0 : index
    %13 = vector.load %arg4[%c0_9, %c0_10] : memref<128x128xf32, #tpu.memory_space<vmem>>, vector<128x128xf32>
    %cst_11 = arith.constant dense<0.000000e+00> : vector<8x128xf32>
    %14 = tpu.matmul %12, %13, %cst_11 {dimension_numbers = #tpu.dot_dimension_numbers<[1], [0], [0], [1], [0, 0, 1, 1], [], []>} : vector<8x128xf32>, vector<128x128xf32>, vector<8x128xf32> -> vector<8x128xf32>
    %c2 = arith.constant 2 : index
    %c0_12 = arith.constant 0 : index
    %15 = vector.load %arg5[%c2, %c0_12] : memref<8x128xf32, #tpu.memory_space<vmem>>, vector<1x128xf32>
    %16 = vector.broadcast %15 : vector<1x128xf32> to vector<8x128xf32>
    %17 = arith.addf %14, %16 : vector<8x128xf32>
    %c0_13 = arith.constant 0 : index
    %c0_14 = arith.constant 0 : index
    %18 = vector.load %arg6[%c0_13, %c0_14] : memref<8x128xf32, #tpu.memory_space<vmem>>, vector<8x128xf32>
    tpu.vector_store %arg6[%c0_13, %c0_14], %17 {strides = array<i32>} : memref<8x128xf32, #tpu.memory_space<vmem>>, vector<8x128xf32>,
    return
  }
  func.func @transform_0(%arg0: i32) -> (i32, i32) {
    %c0_i32 = arith.constant 0 : i32
    %c0_i32_0 = arith.constant 0 : i32
    return %arg0, %c0_i32 : i32, i32
  }
  func.func @transform_1(%arg0: i32) -> (i32, i32) {
    %c0_i32 = arith.constant 0 : i32
    %c0_i32_0 = arith.constant 0 : i32
    %c0_i32_1 = arith.constant 0 : i32
    return %c0_i32, %c0_i32_0 : i32, i32
  }
  func.func @transform_2(%arg0: i32) -> (i32, i32) {
    %c0_i32 = arith.constant 0 : i32
    %c0_i32_0 = arith.constant 0 : i32
    %c0_i32_1 = arith.constant 0 : i32
    return %c0_i32, %c0_i32_0 : i32, i32
  }
  func.func @transform_3(%arg0: i32) -> (i32, i32) {
    %c0_i32 = arith.constant 0 : i32
    %c0_i32_0 = arith.constant 0 : i32
    %c0_i32_1 = arith.constant 0 : i32
    return %c0_i32, %c0_i32_0 : i32, i32
  }
  func.func @transform_4(%arg0: i32) -> (i32, i32) {
    %c0_i32 = arith.constant 0 : i32
    %c0_i32_0 = arith.constant 0 : i32
    %c0_i32_1 = arith.constant 0 : i32
    return %c0_i32, %c0_i32_0 : i32, i32
  }
  func.func @transform_5(%arg0: i32) -> (i32, i32) {
    %c0_i32 = arith.constant 0 : i32
    %c0_i32_0 = arith.constant 0 : i32
    return %arg0, %c0_i32 : i32, i32
  }
}

</mosaic_0001>

<llo_original>
// kernel: tpu_custom_call.1
$region0: #{tpu_custom_call.1}
  #allocation0 [shape = 'u32[]', space=smem, size = 0x4, offset = 0x4, fixed_abs, tag = 'smem constant byte address 0x4 - core index']
  #allocation1 [shape = 'u32[144,128]{1,0:T(1,128)}', space=vmem, size = 0x12000, scoped, tag = 'internal scratch']
  %s0 = inlined_call_operand.hbm [shape: f32[8,32], index: 0, kind: input, shape index: {}]
  %s1 = inlined_call_operand.hbm [shape: f32[32,128], index: 1, kind: input, shape index: {}]
  %s2 = inlined_call_operand.hbm [shape: f32[128,128], index: 2, kind: input, shape index: {}]
  %s3 = inlined_call_operand.hbm [shape: f32[128,128], index: 3, kind: input, shape index: {}]
  %s4 = inlined_call_operand.vmem [shape: f32[8,128], index: 4, kind: input, shape index: {}]
  %s5 = inlined_call_operand.hbm [shape: f32[8,128], index: 5, kind: output, shape index: {}]
  %s6 = sld [smem:[#allocation0]]
  $region46: #{tpu_custom_call.1} parent=0
    _
  %s8 = ssub.s32 1, %s6
  %s9 = scalar_select 0, %s8, %s6
  $region1: #{tpu_custom_call.1} parent=0
    #allocation2 [shape = 'u8[4096]{0}', space=vmem, size = 0x1000, scoped, tag = 'input window, operand 0, single buffered']
    #allocation3 [shape = 's32[1]{0}', space=sflag, size = 0x4, scoped, tag = 'scoped memory for tpu_custom_call.1']
    #allocation4 [shape = 's32[1]{0}', space=sflag, size = 0x4, scoped, tag = 'scoped memory for tpu_custom_call.1']
    #allocation5 [shape = 'u8[16384]{0}', space=vmem, size = 0x4000, scoped, tag = 'input window, operand 1, single buffered']
    #allocation6 [shape = 's32[1]{0}', space=sflag, size = 0x4, scoped, tag = 'scoped memory for tpu_custom_call.1']
    #allocation7 [shape = 'u8[65536]{0}', space=vmem, size = 0x10000, scoped, tag = 'input window, operand 2, single buffered']
    #allocation8 [shape = 'u8[65536]{0}', space=vmem, size = 0x10000, scoped, tag = 'input window, operand 3, single buffered']
    #allocation9 [shape = 's32[1]{0}', space=sflag, size = 0x4, scoped, tag = 'scoped memory for tpu_custom_call.1']
    #allocation10 [shape = 'u8[4096]{0}', space=vmem, size = 0x1000, scoped, tag = 'output window, operand 0, single buffered']
    %10 = vsyncpa [#allocation3], 0
    %11 = vsyncpa [#allocation6], 0
    %12 = vsyncpa [#allocation9], 0
    %13 = vsyncpa [#allocation4], 0
    // Predicated region
    $region2: #{tpu_custom_call.1} parent=1 // pred_check
      _
    $region3: #{tpu_custom_call.1} parent=1 // pred_check_branch
      %15 = sbr.rel (0) target = $region5
    $region4: #{tpu_custom_call.1} parent=1 // pred_region
      %s17 = ssub.s32 128, 128
      %18 = vsyncadd [#allocation3], %s17
      %s20 = sshll.u32 [#allocation2], 4
      %s21 = int_to_ptr.vmem [resolvable:$true] %s20
      %23 = dma.hbm_to_vmem [thread:$0]  %s0, 128, %s21, [#allocation3]
    $region5: #{tpu_custom_call.1} parent=1 // pred_fallthru
      _
    // Predicated region
    $region6: #{tpu_custom_call.1} parent=1 // pred_check
      _
    $region7: #{tpu_custom_call.1} parent=1 // pred_check_branch
      %25 = sbr.rel (0) target = $region9
    $region8: #{tpu_custom_call.1} parent=1 // pred_region
      %s27 = ssub.s32 512, 512
      %28 = vsyncadd [#allocation6], %s27
      %s29 = sshll.u32 [#allocation5], 4
      %s30 = int_to_ptr.vmem [resolvable:$true] %s29
      %35 = dma.hbm_to_vmem [thread:$0]  %s1, 512, %s30, [#allocation6], 128, 128, 8
    $region9: #{tpu_custom_call.1} parent=1 // pred_fallthru
      _
    // Predicated region
    $region10: #{tpu_custom_call.1} parent=1 // pred_check
      _
    $region11: #{tpu_custom_call.1} parent=1 // pred_check_branch
      %37 = sbr.rel (0) target = $region13
    $region12: #{tpu_custom_call.1} parent=1 // pred_region
      %s39 = ssub.s32 2048, 2048
      %40 = vsyncadd [#allocation6], %s39
      %s41 = sshll.u32 [#allocation7], 4
      %s42 = int_to_ptr.vmem [resolvable:$true] %s41
      %47 = dma.hbm_to_vmem [thread:$0]  %s2, 2048, %s42, [#allocation6], 128, 128, 8
    $region13: #{tpu_custom_call.1} parent=1 // pred_fallthru
      _
    // Predicated region
    $region14: #{tpu_custom_call.1} parent=1 // pred_check
      _
    $region15: #{tpu_custom_call.1} parent=1 // pred_check_branch
      %49 = sbr.rel (0) target = $region17
    $region16: #{tpu_custom_call.1} parent=1 // pred_region
      %s51 = ssub.s32 2048, 2048
      %52 = vsyncadd [#allocation9], %s51
      %s53 = sshll.u32 [#allocation8], 4
      %s54 = int_to_ptr.vmem [resolvable:$true] %s53
      %59 = dma.hbm_to_vmem [thread:$0]  %s3, 2048, %s54, [#allocation9], 128, 128, 8
    $region17: #{tpu_custom_call.1} parent=1 // pred_fallthru
      _
    // Predicated region
    $region18: #{tpu_custom_call.1} parent=1 // pred_check
      _
    $region19: #{tpu_custom_call.1} parent=1 // pred_check_branch
      %61 = sbr.rel (0) target = $region21
    $region20: #{tpu_custom_call.1} parent=1 // pred_region
      _
    $region21: #{tpu_custom_call.1} parent=1 // pred_fallthru
      _
    // Predicated region
    $region22: #{tpu_custom_call.1} parent=1 // pred_check
      _
    $region23: #{tpu_custom_call.1} parent=1 // pred_check_branch
      %63 = sbr.rel (0) target = $region25
    $region24: #{tpu_custom_call.1} parent=1 // pred_region
      %64 = dma.done [#allocation3], 128
    $region25: #{tpu_custom_call.1} parent=1 // pred_fallthru
      _
    // Predicated region
    $region26: #{tpu_custom_call.1} parent=1 // pred_check
      _
    $region27: #{tpu_custom_call.1} parent=1 // pred_check_branch
      %66 = sbr.rel (0) target = $region29
    $region28: #{tpu_custom_call.1} parent=1 // pred_region
      %67 = dma.done [#allocation6], 512
    $region29: #{tpu_custom_call.1} parent=1 // pred_fallthru
      _
    // Predicated region
    $region30: #{tpu_custom_call.1} parent=1 // pred_check
      _
    $region31: #{tpu_custom_call.1} parent=1 // pred_check_branch
      %69 = sbr.rel (0) target = $region33
    $region32: #{tpu_custom_call.1} parent=1 // pred_region
      %70 = dma.done [#allocation6], 2048
    $region33: #{tpu_custom_call.1} parent=1 // pred_fallthru
      _
    // Predicated region
    $region34: #{tpu_custom_call.1} parent=1 // pred_check
      _
    $region35: #{tpu_custom_call.1} parent=1 // pred_check_branch
      %72 = sbr.rel (0) target = $region37
    $region36: #{tpu_custom_call.1} parent=1 // pred_region
      %73 = dma.done [#allocation9], 2048
    $region37: #{tpu_custom_call.1} parent=1 // pred_fallthru
      _
    %v74 = vld [vmem:[#allocation2] sm:$0xff]
    %v75 = vld [vmem:[#allocation5] sm:$0xff]
    %v76 = vld [vmem:[#allocation5 + $0x8] sm:$0xff]
    %v77 = vld [vmem:[#allocation5 + $0x10] sm:$0xff]
    %v78 = vld [vmem:[#allocation5 + $0x18] sm:$0xff]
    %v79 = vld [vmem:[%s4] sm:$0x1]
    %v80 = vlaneseq
    %v81 = vshrl.u32 %v80, 7
    %v82 = vsub.s32 0, %v81
    %v83 = vrot.slane %v79, %v82
    %vm84 = vcmask 261120
    %v86 = vsel %vm84, %v74, 0
    %88 = vmatprep.subr.mxu0 0.0
    %89 = vmatpush1.msra.mxu0 %v75
    %90 = vmatprep.subr.mxu0 0.0
    %91 = vmatpush1.msra.mxu0 %v76
    %92 = vmatprep.subr.mxu0 0.0
    %93 = vmatpush1.msra.mxu0 %v77
    %94 = vmatprep.subr.mxu0 0.0
    %95 = vmatpush1.msra.mxu0 %v78
    %96 = vmatprep.subr.mxu0 0.0
    %97 = vmatpush1.msra.mxu0 0.0
    %98 = vmatprep.subr.mxu0 0.0
    %99 = vmatpush1.msra.mxu0 0.0
    %100 = vmatprep.subr.mxu0 0.0
    %101 = vmatpush1.msra.mxu0 0.0
    %102 = vmatprep.subr.mxu0 0.0
    %103 = vmatpush1.msra.mxu0 0.0
    %104 = vmatprep.subr.mxu0 0.0
    %105 = vmatpush1.msra.mxu0 0.0
    %106 = vmatprep.subr.mxu0 0.0
    %107 = vmatpush1.msra.mxu0 0.0
    %108 = vmatprep.subr.mxu0 0.0
    %109 = vmatpush1.msra.mxu0 0.0
    %110 = vmatprep.subr.mxu0 0.0
    %111 = vmatpush1.msra.mxu0 0.0
    %112 = vmatprep.subr.mxu0 0.0
    %113 = vmatpush1.msra.mxu0 0.0
    %114 = vmatprep.subr.mxu0 0.0
    %115 = vmatpush1.msra.mxu0 0.0
    %116 = vmatprep.subr.mxu0 0.0
    %117 = vmatpush1.msra.mxu0 0.0
    %118 = vmatprep.subr.mxu0 0.0
    %119 = vmatpush1.msra.mxu0 0.0
    %120 = vmatprep.subr.mxu0 0.0
    %121 = vmatpush1.msra.mxu0 0.0
    %122 = vmatprep.subr.mxu0 0.0
    %123 = vmatpush1.msra.mxu0 0.0
    %124 = vmatprep.subr.mxu0 0.0
    %125 = vmatpush1.msra.mxu0 0.0
    %126 = vmatprep.subr.mxu0 0.0
    %127 = vmatpush1.msra.mxu0 0.0
    %128 = vmatprep.subr.mxu0 0.0
    %129 = vmatpush1.msra.mxu0 0.0
    %130 = vmatprep.subr.mxu0 0.0
    %131 = vmatpush1.msra.mxu0 0.0
    %132 = vmatprep.subr.mxu0 0.0
    %133 = vmatpush1.msra.mxu0 0.0
    %134 = vmatprep.subr.mxu0 0.0
    %135 = vmatpush1.msra.mxu0 0.0
    %136 = vmatprep.subr.mxu0 0.0
    %137 = vmatpush1.msra.mxu0 0.0
    %138 = vmatprep.subr.mxu0 0.0
    %139 = vmatpush1.msra.mxu0 0.0
    %140 = vmatprep.subr.mxu0 0.0
    %141 = vmatpush1.msra.mxu0 0.0
    %142 = vmatprep.subr.mxu0 0.0
    %143 = vmatpush1.msra.mxu0 0.0
    %144 = vmatprep.subr.mxu0 0.0
    %145 = vmatpush1.msra.mxu0 0.0
    %146 = vmatprep.subr.mxu0 0.0
    %147 = vmatpush1.msra.mxu0 0.0
    %148 = vmatprep.subr.mxu0 0.0
    %149 = vmatpush1.msra.mxu0 0.0
    %150 = vmatprep.subr.mxu0 0.0
    %151 = vmatpush1.msra.mxu0 0.0
    %152 = vmatprep.mubr.f32.mxu0 0.0
    %153 = vmatmul.mubr.f32.gmra.mrb[0].mxu0 %v86
    %v154 = vpop.f32.mrb[0].mxu0
    %v155 = vadd.f32 %v83, %v154
    %v156 = vpop.f32.mrb[0].mxu0
    %157 = vdwg.mxu0
    %v158 = vtanh.pop %v155
    %v159 = vld [vmem:[#allocation7] sm:$0xff]
    %v160 = vld [vmem:[#allocation7 + $0x8] sm:$0xff]
    %v161 = vld [vmem:[#allocation7 + $0x10] sm:$0xff]
    %v162 = vld [vmem:[#allocation7 + $0x18] sm:$0xff]
    %v163 = vld [vmem:[#allocation7 + $0x20] sm:$0xff]
    %v164 = vld [vmem:[#allocation7 + $0x28] sm:$0xff]
    %v165 = vld [vmem:[#allocation7 + $0x30] sm:$0xff]
    %v166 = vld [vmem:[#allocation7 + $0x38] sm:$0xff]
    %v167 = vld [vmem:[#allocation7 + $0x40] sm:$0xff]
    %v168 = vld [vmem:[#allocation7 + $0x48] sm:$0xff]
    %v169 = vld [vmem:[#allocation7 + $0x50] sm:$0xff]
    %v170 = vld [vmem:[#allocation7 + $0x58] sm:$0xff]
    %v171 = vld [vmem:[#allocation7 + $0x60] sm:$0xff]
    %v172 = vld [vmem:[#allocation7 + $0x68] sm:$0xff]
    %v173 = vld [vmem:[#allocation7 + $0x70] sm:$0xff]
    %v174 = vld [vmem:[#allocation7 + $0x78] sm:$0xff]
    %v175 = vld [vmem:[%s4 + $0x1] sm:$0x1]
    %v176 = vlaneseq
    %v177 = vshrl.u32 %v176, 7
    %v178 = vsub.s32 0, %v177
    %v179 = vrot.slane %v175, %v178
    %180 = vmatprep.subr.mxu0 0.0
    %181 = vmatpush1.msra.mxu0 %v159
    %182 = vmatprep.subr.mxu0 0.0
    %183 = vmatpush1.msra.mxu0 %v160
    %184 = vmatprep.subr.mxu0 0.0
    %185 = vmatpush1.msra.mxu0 %v161
    %186 = vmatprep.subr.mxu0 0.0
    %187 = vmatpush1.msra.mxu0 %v162
    %188 = vmatprep.subr.mxu0 0.0
    %189 = vmatpush1.msra.mxu0 %v163
    %190 = vmatprep.subr.mxu0 0.0
    %191 = vmatpush1.msra.mxu0 %v164
    %192 = vmatprep.subr.mxu0 0.0
    %193 = vmatpush1.msra.mxu0 %v165
    %194 = vmatprep.subr.mxu0 0.0
    %195 = vmatpush1.msra.mxu0 %v166
    %196 = vmatprep.subr.mxu0 0.0
    %197 = vmatpush1.msra.mxu0 %v167
    %198 = vmatprep.subr.mxu0 0.0
    %199 = vmatpush1.msra.mxu0 %v168
    %200 = vmatprep.subr.mxu0 0.0
    %201 = vmatpush1.msra.mxu0 %v169
    %202 = vmatprep.subr.mxu0 0.0
    %203 = vmatpush1.msra.mxu0 %v170
    %204 = vmatprep.subr.mxu0 0.0
    %205 = vmatpush1.msra.mxu0 %v171
    %206 = vmatprep.subr.mxu0 0.0
    %207 = vmatpush1.msra.mxu0 %v172
    %208 = vmatprep.subr.mxu0 0.0
    %209 = vmatpush1.msra.mxu0 %v173
    %210 = vmatprep.subr.mxu0 0.0
    %211 = vmatpush1.msra.mxu0 %v174
    %212 = vmatprep.subr.mxu0 0.0
    %213 = vmatpush1.msra.mxu0 0.0
    %214 = vmatprep.subr.mxu0 0.0
    %215 = vmatpush1.msra.mxu0 0.0
    %216 = vmatprep.subr.mxu0 0.0
    %217 = vmatpush1.msra.mxu0 0.0
    %218 = vmatprep.subr.mxu0 0.0
    %219 = vmatpush1.msra.mxu0 0.0
    %220 = vmatprep.subr.mxu0 0.0
    %221 = vmatpush1.msra.mxu0 0.0
    %222 = vmatprep.subr.mxu0 0.0
    %223 = vmatpush1.msra.mxu0 0.0
    %224 = vmatprep.subr.mxu0 0.0
    %225 = vmatpush1.msra.mxu0 0.0
    %226 = vmatprep.subr.mxu0 0.0
    %227 = vmatpush1.msra.mxu0 0.0
    %228 = vmatprep.subr.mxu0 0.0
    %229 = vmatpush1.msra.mxu0 0.0
    %230 = vmatprep.subr.mxu0 0.0
    %231 = vmatpush1.msra.mxu0 0.0
    %232 = vmatprep.subr.mxu0 0.0
    %233 = vmatpush1.msra.mxu0 0.0
    %234 = vmatprep.subr.mxu0 0.0
    %235 = vmatpush1.msra.mxu0 0.0
    %236 = vmatprep.subr.mxu0 0.0
    %237 = vmatpush1.msra.mxu0 0.0
    %238 = vmatprep.subr.mxu0 0.0
    %239 = vmatpush1.msra.mxu0 0.0
    %240 = vmatprep.subr.mxu0 0.0
    %241 = vmatpush1.msra.mxu0 0.0
    %242 = vmatprep.subr.mxu0 0.0
    %243 = vmatpush1.msra.mxu0 0.0
    %244 = vmatprep.mubr.f32.mxu0 0.0
    %245 = vmatmul.mubr.f32.gmra.mrb[0].mxu0 %v158
    %v246 = vpop.f32.mrb[0].mxu0
    %v247 = vadd.f32 %v179, %v246
    %v248 = vpop.f32.mrb[0].mxu0
    %249 = vdwg.mxu0
    %v250 = vtanh.pop %v247
    %v251 = vld [vmem:[#allocation8] sm:$0xff]
    %v252 = vld [vmem:[#allocation8 + $0x8] sm:$0xff]
    %v253 = vld [vmem:[#allocation8 + $0x10] sm:$0xff]
    %v254 = vld [vmem:[#allocation8 + $0x18] sm:$0xff]
    %v255 = vld [vmem:[#allocation8 + $0x20] sm:$0xff]
    %v256 = vld [vmem:[#allocation8 + $0x28] sm:$0xff]
    %v257 = vld [vmem:[#allocation8 + $0x30] sm:$0xff]
    %v258 = vld [vmem:[#allocation8 + $0x38] sm:$0xff]
    %v259 = vld [vmem:[#allocation8 + $0x40] sm:$0xff]
    %v260 = vld [vmem:[#allocation8 + $0x48] sm:$0xff]
    %v261 = vld [vmem:[#allocation8 + $0x50] sm:$0xff]
    %v262 = vld [vmem:[#allocation8 + $0x58] sm:$0xff]
    %v263 = vld [vmem:[#allocation8 + $0x60] sm:$0xff]
    %v264 = vld [vmem:[#allocation8 + $0x68] sm:$0xff]
    %v265 = vld [vmem:[#allocation8 + $0x70] sm:$0xff]
    %v266 = vld [vmem:[#allocation8 + $0x78] sm:$0xff]
    %v267 = vld [vmem:[%s4 + $0x2] sm:$0x1]
    %v268 = vlaneseq
    %v269 = vshrl.u32 %v268, 7
    %v270 = vsub.s32 0, %v269
    %v271 = vrot.slane %v267, %v270
    %272 = vmatprep.subr.mxu0 0.0
    %273 = vmatpush1.msra.mxu0 %v251
    %274 = vmatprep.subr.mxu0 0.0
    %275 = vmatpush1.msra.mxu0 %v252
    %276 = vmatprep.subr.mxu0 0.0
    %277 = vmatpush1.msra.mxu0 %v253
    %278 = vmatprep.subr.mxu0 0.0
    %279 = vmatpush1.msra.mxu0 %v254
    %280 = vmatprep.subr.mxu0 0.0
    %281 = vmatpush1.msra.mxu0 %v255
    %282 = vmatprep.subr.mxu0 0.0
    %283 = vmatpush1.msra.mxu0 %v256
    %284 = vmatprep.subr.mxu0 0.0
    %285 = vmatpush1.msra.mxu0 %v257
    %286 = vmatprep.subr.mxu0 0.0
    %287 = vmatpush1.msra.mxu0 %v258
    %288 = vmatprep.subr.mxu0 0.0
    %289 = vmatpush1.msra.mxu0 %v259
    %290 = vmatprep.subr.mxu0 0.0
    %291 = vmatpush1.msra.mxu0 %v260
    %292 = vmatprep.subr.mxu0 0.0
    %293 = vmatpush1.msra.mxu0 %v261
    %294 = vmatprep.subr.mxu0 0.0
    %295 = vmatpush1.msra.mxu0 %v262
    %296 = vmatprep.subr.mxu0 0.0
    %297 = vmatpush1.msra.mxu0 %v263
    %298 = vmatprep.subr.mxu0 0.0
    %299 = vmatpush1.msra.mxu0 %v264
    %300 = vmatprep.subr.mxu0 0.0
    %301 = vmatpush1.msra.mxu0 %v265
    %302 = vmatprep.subr.mxu0 0.0
    %303 = vmatpush1.msra.mxu0 %v266
    %304 = vmatprep.subr.mxu0 0.0
    %305 = vmatpush1.msra.mxu0 0.0
    %306 = vmatprep.subr.mxu0 0.0
    %307 = vmatpush1.msra.mxu0 0.0
    %308 = vmatprep.subr.mxu0 0.0
    %309 = vmatpush1.msra.mxu0 0.0
    %310 = vmatprep.subr.mxu0 0.0
    %311 = vmatpush1.msra.mxu0 0.0
    %312 = vmatprep.subr.mxu0 0.0
    %313 = vmatpush1.msra.mxu0 0.0
    %314 = vmatprep.subr.mxu0 0.0
    %315 = vmatpush1.msra.mxu0 0.0
    %316 = vmatprep.subr.mxu0 0.0
    %317 = vmatpush1.msra.mxu0 0.0
    %318 = vmatprep.subr.mxu0 0.0
    %319 = vmatpush1.msra.mxu0 0.0
    %320 = vmatprep.subr.mxu0 0.0
    %321 = vmatpush1.msra.mxu0 0.0
    %322 = vmatprep.subr.mxu0 0.0
    %323 = vmatpush1.msra.mxu0 0.0
    %324 = vmatprep.subr.mxu0 0.0
    %325 = vmatpush1.msra.mxu0 0.0
    %326 = vmatprep.subr.mxu0 0.0
    %327 = vmatpush1.msra.mxu0 0.0
    %328 = vmatprep.subr.mxu0 0.0
    %329 = vmatpush1.msra.mxu0 0.0
    %330 = vmatprep.subr.mxu0 0.0
    %331 = vmatpush1.msra.mxu0 0.0
    %332 = vmatprep.subr.mxu0 0.0
    %333 = vmatpush1.msra.mxu0 0.0
    %334 = vmatprep.subr.mxu0 0.0
    %335 = vmatpush1.msra.mxu0 0.0
    %336 = vmatprep.mubr.f32.mxu0 0.0
    %337 = vmatmul.mubr.f32.gmra.mrb[0].mxu0 %v250
    %v338 = vpop.f32.mrb[0].mxu0
    %v339 = vadd.f32 %v271, %v338
    %v340 = vpop.f32.mrb[0].mxu0
    %341 = vdwg.mxu0
    %342 = vst [vmem:[#allocation10] sm:$0xff] %v339
    // Predicated region
    $region38: #{tpu_custom_call.1} parent=1 // pred_check
      _
    $region39: #{tpu_custom_call.1} parent=1 // pred_check_branch
      %344 = sbr.rel (0) target = $region41
    $region40: #{tpu_custom_call.1} parent=1 // pred_region
      %s346 = ssub.s32 128, 128
      %347 = vsyncadd [#allocation4], %s346
      %s349 = sshll.u32 [#allocation10], 4
      %s350 = int_to_ptr.vmem [resolvable:$true] %s349
      %352 = dma.vmem_to_hbm [thread:$0]  %s350, 128, %s5, [#allocation4]
    $region41: #{tpu_custom_call.1} parent=1 // pred_fallthru
      _
    // Predicated region
    $region42: #{tpu_custom_call.1} parent=1 // pred_check
      _
    $region43: #{tpu_custom_call.1} parent=1 // pred_check_branch
      %354 = sbr.rel (0) target = $region45
    $region44: #{tpu_custom_call.1} parent=1 // pred_region
      %355 = dma.done [#allocation4], 128
    $region45: #{tpu_custom_call.1} parent=1 // pred_fallthru
      _
    %356 = vsyncpa [#allocation3], 1
    %357 = vsyncpa [#allocation6], 1
    %358 = vsyncpa [#allocation9], 1
    %359 = vsyncpa [#allocation4], 1

// kernel: tpu_custom_call.1
$region0: #{tpu_custom_call.1}
  #allocation0 [shape = 'u32[]', space=smem, size = 0x4, offset = 0x4, fixed_abs, tag = 'smem constant byte address 0x4 - core index']
  #allocation1 [shape = 'u32[144,128]{1,0:T(1,128)}', space=vmem, size = 0x12000, scoped, tag = 'internal scratch']
  %s0 = inlined_call_operand.hbm [shape: f32[8,32], index: 0, kind: input, shape index: {}]
  %s1 = inlined_call_operand.hbm [shape: f32[32,128], index: 1, kind: input, shape index: {}]
  %s2 = inlined_call_operand.hbm [shape: f32[128,128], index: 2, kind: input, shape index: {}]
  %s3 = inlined_call_operand.hbm [shape: f32[128,128], index: 3, kind: input, shape index: {}]
  %s4 = inlined_call_operand.vmem [shape: f32[8,128], index: 4, kind: input, shape index: {}]
  %s5 = inlined_call_operand.hbm [shape: f32[8,128], index: 5, kind: output, shape index: {}]
  %s6 = sld [smem:[#allocation0]]
  $region46: #{tpu_custom_call.1} parent=0
    _
  %s8 = ssub.s32 1, %s6
  %s9 = scalar_select 0, %s8, %s6
  $region1: #{tpu_custom_call.1} parent=0
    #allocation2 [shape = 'u8[4096]{0}', space=vmem, size = 0x1000, scoped, tag = 'input window, operand 0, single buffered']
    #allocation3 [shape = 's32[1]{0}', space=sflag, size = 0x4, scoped, tag = 'scoped memory for tpu_custom_call.1']
    #allocation4 [shape = 's32[1]{0}', space=sflag, size = 0x4, scoped, tag = 'scoped memory for tpu_custom_call.1']
    #allocation5 [shape = 'u8[16384]{0}', space=vmem, size = 0x4000, scoped, tag = 'input window, operand 1, single buffered']
    #allocation6 [shape = 's32[1]{0}', space=sflag, size = 0x4, scoped, tag = 'scoped memory for tpu_custom_call.1']
    #allocation7 [shape = 'u8[65536]{0}', space=vmem, size = 0x10000, scoped, tag = 'input window, operand 2, single buffered']
    #allocation8 [shape = 'u8[65536]{0}', space=vmem, size = 0x10000, scoped, tag = 'input window, operand 3, single buffered']
    #allocation9 [shape = 's32[1]{0}', space=sflag, size = 0x4, scoped, tag = 'scoped memory for tpu_custom_call.1']
    #allocation10 [shape = 'u8[4096]{0}', space=vmem, size = 0x1000, scoped, tag = 'output window, operand 0, single buffered']
    %10 = vsyncpa [#allocation3], 0
    %11 = vsyncpa [#allocation6], 0
    %12 = vsyncpa [#allocation9], 0
    %13 = vsyncpa [#allocation4], 0
    // Predicated region
    $region2: #{tpu_custom_call.1} parent=1 // pred_check
      _
    $region3: #{tpu_custom_call.1} parent=1 // pred_check_branch
      %15 = sbr.rel (0) target = $region5
    $region4: #{tpu_custom_call.1} parent=1 // pred_region
      %s17 = ssub.s32 128, 128
      %18 = vsyncadd [#allocation3], %s17
      %s20 = sshll.u32 [#allocation2], 4
      %s21 = int_to_ptr.vmem [resolvable:$true] %s20
      %23 = dma.hbm_to_vmem [thread:$0]  %s0, 128, %s21, [#allocation3]
    $region5: #{tpu_custom_call.1} parent=1 // pred_fallthru
      _
    // Predicated region
    $region6: #{tpu_custom_call.1} parent=1 // pred_check
      _
    $region7: #{tpu_custom_call.1} parent=1 // pred_check_branch
      %25 = sbr.rel (0) target = $region9
    $region8: #{tpu_custom_call.1} parent=1 // pred_region
      %s27 = ssub.s32 512, 512
      %28 = vsyncadd [#allocation6], %s27
      %s29 = sshll.u32 [#allocation5], 4
      %s30 = int_to_ptr.vmem [resolvable:$true] %s29
      %35 = dma.hbm_to_vmem [thread:$0]  %s1, 512, %s30, [#allocation6], 128, 128, 8
    $region9: #{tpu_custom_call.1} parent=1 // pred_fallthru
      _
    // Predicated region
    $region10: #{tpu_custom_call.1} parent=1 // pred_check
      _
    $region11: #{tpu_custom_call.1} parent=1 // pred_check_branch
      %37 = sbr.rel (0) target = $region13
    $region12: #{tpu_custom_call.1} parent=1 // pred_region
      %s39 = ssub.s32 2048, 2048
      %40 = vsyncadd [#allocation6], %s39
      %s41 = sshll.u32 [#allocation7], 4
      %s42 = int_to_ptr.vmem [resolvable:$true] %s41
      %47 = dma.hbm_to_vmem [thread:$0]  %s2, 2048, %s42, [#allocation6], 128, 128, 8
    $region13: #{tpu_custom_call.1} parent=1 // pred_fallthru
      _
    // Predicated region
    $region14: #{tpu_custom_call.1} parent=1 // pred_check
      _
    $region15: #{tpu_custom_call.1} parent=1 // pred_check_branch
      %49 = sbr.rel (0) target = $region17
    $region16: #{tpu_custom_call.1} parent=1 // pred_region
      %s51 = ssub.s32 2048, 2048
      %52 = vsyncadd [#allocation9], %s51
      %s53 = sshll.u32 [#allocation8], 4
      %s54 = int_to_ptr.vmem [resolvable:$true] %s53
      %59 = dma.hbm_to_vmem [thread:$0]  %s3, 2048, %s54, [#allocation9], 128, 128, 8
    $region17: #{tpu_custom_call.1} parent=1 // pred_fallthru
      _
    // Predicated region
    $region18: #{tpu_custom_call.1} parent=1 // pred_check
      _
    $region19: #{tpu_custom_call.1} parent=1 // pred_check_branch
      %61 = sbr.rel (0) target = $region21
    $region20: #{tpu_custom_call.1} parent=1 // pred_region
      _
    $region21: #{tpu_custom_call.1} parent=1 // pred_fallthru
      _
    // Predicated region
    $region22: #{tpu_custom_call.1} parent=1 // pred_check
      _
    $region23: #{tpu_custom_call.1} parent=1 // pred_check_branch
      %63 = sbr.rel (0) target = $region25
    $region24: #{tpu_custom_call.1} parent=1 // pred_region
      %64 = dma.done [#allocation3], 128
    $region25: #{tpu_custom_call.1} parent=1 // pred_fallthru
      _
    // Predicated region
    $region26: #{tpu_custom_call.1} parent=1 // pred_check
      _
    $region27: #{tpu_custom_call.1} parent=1 // pred_check_branch
      %66 = sbr.rel (0) target = $region29
    $region28: #{tpu_custom_call.1} parent=1 // pred_region
      %67 = dma.done [#allocation6], 512
    $region29: #{tpu_custom_call.1} parent=1 // pred_fallthru
      _
    // Predicated region
    $region30: #{tpu_custom_call.1} parent=1 // pred_check
      _
    $region31: #{tpu_custom_call.1} parent=1 // pred_check_branch
      %69 = sbr.rel (0) target = $region33
    $region32: #{tpu_custom_call.1} parent=1 // pred_region
      %70 = dma.done [#allocation6], 2048
    $region33: #{tpu_custom_call.1} parent=1 // pred_fallthru
      _
    // Predicated region
    $region34: #{tpu_custom_call.1} parent=1 // pred_check
      _
    $region35: #{tpu_custom_call.1} parent=1 // pred_check_branch
      %72 = sbr.rel (0) target = $region37
    $region36: #{tpu_custom_call.1} parent=1 // pred_region
      %73 = dma.done [#allocation9], 2048
    $region37: #{tpu_custom_call.1} parent=1 // pred_fallthru
      _
    %v74 = vld [vmem:[#allocation2] sm:$0xff]
    %v75 = vld [vmem:[#allocation5] sm:$0xff]
    %v76 = vld [vmem:[#allocation5 + $0x8] sm:$0xff]
    %v77 = vld [vmem:[#allocation5 + $0x10] sm:$0xff]
    %v78 = vld [vmem:[#allocation5 + $0x18] sm:$0xff]
    %v79 = vld [vmem:[%s4] sm:$0x1]
    %v80 = vlaneseq
    %v81 = vshrl.u32 %v80, 7
    %v82 = vsub.s32 0, %v81
    %v83 = vrot.slane %v79, %v82
    %vm84 = vcmask 261120
    %v86 = vsel %vm84, %v74, 0
    %88 = vmatprep.subr.mxu0 0.0
    %89 = vmatpush1.msra.mxu0 %v75
    %90 = vmatprep.subr.mxu0 0.0
    %91 = vmatpush1.msra.mxu0 %v76
    %92 = vmatprep.subr.mxu0 0.0
    %93 = vmatpush1.msra.mxu0 %v77
    %94 = vmatprep.subr.mxu0 0.0
    %95 = vmatpush1.msra.mxu0 %v78
    %96 = vmatprep.subr.mxu0 0.0
    %97 = vmatpush1.msra.mxu0 0.0
    %98 = vmatprep.subr.mxu0 0.0
    %99 = vmatpush1.msra.mxu0 0.0
    %100 = vmatprep.subr.mxu0 0.0
    %101 = vmatpush1.msra.mxu0 0.0
    %102 = vmatprep.subr.mxu0 0.0
    %103 = vmatpush1.msra.mxu0 0.0
    %104 = vmatprep.subr.mxu0 0.0
    %105 = vmatpush1.msra.mxu0 0.0
    %106 = vmatprep.subr.mxu0 0.0
    %107 = vmatpush1.msra.mxu0 0.0
    %108 = vmatprep.subr.mxu0 0.0
    %109 = vmatpush1.msra.mxu0 0.0
    %110 = vmatprep.subr.mxu0 0.0
    %111 = vmatpush1.msra.mxu0 0.0
    %112 = vmatprep.subr.mxu0 0.0
    %113 = vmatpush1.msra.mxu0 0.0
    %114 = vmatprep.subr.mxu0 0.0
    %115 = vmatpush1.msra.mxu0 0.0
    %116 = vmatprep.subr.mxu0 0.0
    %117 = vmatpush1.msra.mxu0 0.0
    %118 = vmatprep.subr.mxu0 0.0
    %119 = vmatpush1.msra.mxu0 0.0
    %120 = vmatprep.subr.mxu0 0.0
    %121 = vmatpush1.msra.mxu0 0.0
    %122 = vmatprep.subr.mxu0 0.0
    %123 = vmatpush1.msra.mxu0 0.0
    %124 = vmatprep.subr.mxu0 0.0
    %125 = vmatpush1.msra.mxu0 0.0
    %126 = vmatprep.subr.mxu0 0.0
    %127 = vmatpush1.msra.mxu0 0.0
    %128 = vmatprep.subr.mxu0 0.0
    %129 = vmatpush1.msra.mxu0 0.0
    %130 = vmatprep.subr.mxu0 0.0
    %131 = vmatpush1.msra.mxu0 0.0
    %132 = vmatprep.subr.mxu0 0.0
    %133 = vmatpush1.msra.mxu0 0.0
    %134 = vmatprep.subr.mxu0 0.0
    %135 = vmatpush1.msra.mxu0 0.0
    %136 = vmatprep.subr.mxu0 0.0
    %137 = vmatpush1.msra.mxu0 0.0
    %138 = vmatprep.subr.mxu0 0.0
    %139 = vmatpush1.msra.mxu0 0.0
    %140 = vmatprep.subr.mxu0 0.0
    %141 = vmatpush1.msra.mxu0 0.0
    %142 = vmatprep.subr.mxu0 0.0
    %143 = vmatpush1.msra.mxu0 0.0
    %144 = vmatprep.subr.mxu0 0.0
    %145 = vmatpush1.msra.mxu0 0.0
    %146 = vmatprep.subr.mxu0 0.0
    %147 = vmatpush1.msra.mxu0 0.0
    %148 = vmatprep.subr.mxu0 0.0
    %149 = vmatpush1.msra.mxu0 0.0
    %150 = vmatprep.subr.mxu0 0.0
    %151 = vmatpush1.msra.mxu0 0.0
    %152 = vmatprep.mubr.f32.mxu0 0.0
    %153 = vmatmul.mubr.f32.gmra.mrb[0].mxu0 %v86
    %v154 = vpop.f32.mrb[0].mxu0
    %v155 = vadd.f32 %v83, %v154
    %v156 = vpop.f32.mrb[0].mxu0
    %157 = vdwg.mxu0
    %v158 = vtanh.pop %v155
    %v159 = vld [vmem:[#allocation7] sm:$0xff]
    %v160 = vld [vmem:[#allocation7 + $0x8] sm:$0xff]
    %v161 = vld [vmem:[#allocation7 + $0x10] sm:$0xff]
    %v162 = vld [vmem:[#allocation7 + $0x18] sm:$0xff]
    %v163 = vld [vmem:[#allocation7 + $0x20] sm:$0xff]
    %v164 = vld [vmem:[#allocation7 + $0x28] sm:$0xff]
    %v165 = vld [vmem:[#allocation7 + $0x30] sm:$0xff]
    %v166 = vld [vmem:[#allocation7 + $0x38] sm:$0xff]
    %v167 = vld [vmem:[#allocation7 + $0x40] sm:$0xff]
    %v168 = vld [vmem:[#allocation7 + $0x48] sm:$0xff]
    %v169 = vld [vmem:[#allocation7 + $0x50] sm:$0xff]
    %v170 = vld [vmem:[#allocation7 + $0x58] sm:$0xff]
    %v171 = vld [vmem:[#allocation7 + $0x60] sm:$0xff]
    %v172 = vld [vmem:[#allocation7 + $0x68] sm:$0xff]
    %v173 = vld [vmem:[#allocation7 + $0x70] sm:$0xff]
    %v174 = vld [vmem:[#allocation7 + $0x78] sm:$0xff]
    %v175 = vld [vmem:[%s4 + $0x1] sm:$0x1]
    %v176 = vlaneseq
    %v177 = vshrl.u32 %v176, 7
    %v178 = vsub.s32 0, %v177
    %v179 = vrot.slane %v175, %v178
    %180 = vmatprep.subr.mxu0 0.0
    %181 = vmatpush1.msra.mxu0 %v159
    %182 = vmatprep.subr.mxu0 0.0
    %183 = vmatpush1.msra.mxu0 %v160
    %184 = vmatprep.subr.mxu0 0.0
    %185 = vmatpush1.msra.mxu0 %v161
    %186 = vmatprep.subr.mxu0 0.0
    %187 = vmatpush1.msra.mxu0 %v162
    %188 = vmatprep.subr.mxu0 0.0
    %189 = vmatpush1.msra.mxu0 %v163
    %190 = vmatprep.subr.mxu0 0.0
    %191 = vmatpush1.msra.mxu0 %v164
    %192 = vmatprep.subr.mxu0 0.0
    %193 = vmatpush1.msra.mxu0 %v165
    %194 = vmatprep.subr.mxu0 0.0
    %195 = vmatpush1.msra.mxu0 %v166
    %196 = vmatprep.subr.mxu0 0.0
    %197 = vmatpush1.msra.mxu0 %v167
    %198 = vmatprep.subr.mxu0 0.0
    %199 = vmatpush1.msra.mxu0 %v168
    %200 = vmatprep.subr.mxu0 0.0
    %201 = vmatpush1.msra.mxu0 %v169
    %202 = vmatprep.subr.mxu0 0.0
    %203 = vmatpush1.msra.mxu0 %v170
    %204 = vmatprep.subr.mxu0 0.0
    %205 = vmatpush1.msra.mxu0 %v171
    %206 = vmatprep.subr.mxu0 0.0
    %207 = vmatpush1.msra.mxu0 %v172
    %208 = vmatprep.subr.mxu0 0.0
    %209 = vmatpush1.msra.mxu0 %v173
    %210 = vmatprep.subr.mxu0 0.0
    %211 = vmatpush1.msra.mxu0 %v174
    %212 = vmatprep.subr.mxu0 0.0
    %213 = vmatpush1.msra.mxu0 0.0
    %214 = vmatprep.subr.mxu0 0.0
    %215 = vmatpush1.msra.mxu0 0.0
    %216 = vmatprep.subr.mxu0 0.0
    %217 = vmatpush1.msra.mxu0 0.0
    %218 = vmatprep.subr.mxu0 0.0
    %219 = vmatpush1.msra.mxu0 0.0
    %220 = vmatprep.subr.mxu0 0.0
    %221 = vmatpush1.msra.mxu0 0.0
    %222 = vmatprep.subr.mxu0 0.0
    %223 = vmatpush1.msra.mxu0 0.0
    %224 = vmatprep.subr.mxu0 0.0
    %225 = vmatpush1.msra.mxu0 0.0
    %226 = vmatprep.subr.mxu0 0.0
    %227 = vmatpush1.msra.mxu0 0.0
    %228 = vmatprep.subr.mxu0 0.0
    %229 = vmatpush1.msra.mxu0 0.0
    %230 = vmatprep.subr.mxu0 0.0
    %231 = vmatpush1.msra.mxu0 0.0
    %232 = vmatprep.subr.mxu0 0.0
    %233 = vmatpush1.msra.mxu0 0.0
    %234 = vmatprep.subr.mxu0 0.0
    %235 = vmatpush1.msra.mxu0 0.0
    %236 = vmatprep.subr.mxu0 0.0
    %237 = vmatpush1.msra.mxu0 0.0
    %238 = vmatprep.subr.mxu0 0.0
    %239 = vmatpush1.msra.mxu0 0.0
    %240 = vmatprep.subr.mxu0 0.0
    %241 = vmatpush1.msra.mxu0 0.0
    %242 = vmatprep.subr.mxu0 0.0
    %243 = vmatpush1.msra.mxu0 0.0
    %244 = vmatprep.mubr.f32.mxu0 0.0
    %245 = vmatmul.mubr.f32.gmra.mrb[0].mxu0 %v158
    %v246 = vpop.f32.mrb[0].mxu0
    %v247 = vadd.f32 %v179, %v246
    %v248 = vpop.f32.mrb[0].mxu0
    %249 = vdwg.mxu0
    %v250 = vtanh.pop %v247
    %v251 = vld [vmem:[#allocation8] sm:$0xff]
    %v252 = vld [vmem:[#allocation8 + $0x8] sm:$0xff]
    %v253 = vld [vmem:[#allocation8 + $0x10] sm:$0xff]
    %v254 = vld [vmem:[#allocation8 + $0x18] sm:$0xff]
    %v255 = vld [vmem:[#allocation8 + $0x20] sm:$0xff]
    %v256 = vld [vmem:[#allocation8 + $0x28] sm:$0xff]
    %v257 = vld [vmem:[#allocation8 + $0x30] sm:$0xff]
    %v258 = vld [vmem:[#allocation8 + $0x38] sm:$0xff]
    %v259 = vld [vmem:[#allocation8 + $0x40] sm:$0xff]
    %v260 = vld [vmem:[#allocation8 + $0x48] sm:$0xff]
    %v261 = vld [vmem:[#allocation8 + $0x50] sm:$0xff]
    %v262 = vld [vmem:[#allocation8 + $0x58] sm:$0xff]
    %v263 = vld [vmem:[#allocation8 + $0x60] sm:$0xff]
    %v264 = vld [vmem:[#allocation8 + $0x68] sm:$0xff]
    %v265 = vld [vmem:[#allocation8 + $0x70] sm:$0xff]
    %v266 = vld [vmem:[#allocation8 + $0x78] sm:$0xff]
    %v267 = vld [vmem:[%s4 + $0x2] sm:$0x1]
    %v268 = vlaneseq
    %v269 = vshrl.u32 %v268, 7
    %v270 = vsub.s32 0, %v269
    %v271 = vrot.slane %v267, %v270
    %272 = vmatprep.subr.mxu0 0.0
    %273 = vmatpush1.msra.mxu0 %v251
    %274 = vmatprep.subr.mxu0 0.0
    %275 = vmatpush1.msra.mxu0 %v252
    %276 = vmatprep.subr.mxu0 0.0
    %277 = vmatpush1.msra.mxu0 %v253
    %278 = vmatprep.subr.mxu0 0.0
    %279 = vmatpush1.msra.mxu0 %v254
    %280 = vmatprep.subr.mxu0 0.0
    %281 = vmatpush1.msra.mxu0 %v255
    %282 = vmatprep.subr.mxu0 0.0
    %283 = vmatpush1.msra.mxu0 %v256
    %284 = vmatprep.subr.mxu0 0.0
    %285 = vmatpush1.msra.mxu0 %v257
    %286 = vmatprep.subr.mxu0 0.0
    %287 = vmatpush1.msra.mxu0 %v258
    %288 = vmatprep.subr.mxu0 0.0
    %289 = vmatpush1.msra.mxu0 %v259
    %290 = vmatprep.subr.mxu0 0.0
    %291 = vmatpush1.msra.mxu0 %v260
    %292 = vmatprep.subr.mxu0 0.0
    %293 = vmatpush1.msra.mxu0 %v261
    %294 = vmatprep.subr.mxu0 0.0
    %295 = vmatpush1.msra.mxu0 %v262
    %296 = vmatprep.subr.mxu0 0.0
    %297 = vmatpush1.msra.mxu0 %v263
    %298 = vmatprep.subr.mxu0 0.0
    %299 = vmatpush1.msra.mxu0 %v264
    %300 = vmatprep.subr.mxu0 0.0
    %301 = vmatpush1.msra.mxu0 %v265
    %302 = vmatprep.subr.mxu0 0.0
    %303 = vmatpush1.msra.mxu0 %v266
    %304 = vmatprep.subr.mxu0 0.0
    %305 = vmatpush1.msra.mxu0 0.0
    %306 = vmatprep.subr.mxu0 0.0
    %307 = vmatpush1.msra.mxu0 0.0
    %308 = vmatprep.subr.mxu0 0.0
    %309 = vmatpush1.msra.mxu0 0.0
    %310 = vmatprep.subr.mxu0 0.0
    %311 = vmatpush1.msra.mxu0 0.0
    %312 = vmatprep.subr.mxu0 0.0
    %313 = vmatpush1.msra.mxu0 0.0
    %314 = vmatprep.subr.mxu0 0.0
    %315 = vmatpush1.msra.mxu0 0.0
    %316 = vmatprep.subr.mxu0 0.0
    %317 = vmatpush1.msra.mxu0 0.0
    %318 = vmatprep.subr.mxu0 0.0
    %319 = vmatpush1.msra.mxu0 0.0
    %320 = vmatprep.subr.mxu0 0.0
    %321 = vmatpush1.msra.mxu0 0.0
    %322 = vmatprep.subr.mxu0 0.0
    %323 = vmatpush1.msra.mxu0 0.0
    %324 = vmatprep.subr.mxu0 0.0
    %325 = vmatpush1.msra.mxu0 0.0
    %326 = vmatprep.subr.mxu0 0.0
    %327 = vmatpush1.msra.mxu0 0.0
    %328 = vmatprep.subr.mxu0 0.0
    %329 = vmatpush1.msra.mxu0 0.0
    %330 = vmatprep.subr.mxu0 0.0
    %331 = vmatpush1.msra.mxu0 0.0
    %332 = vmatprep.subr.mxu0 0.0
    %333 = vmatpush1.msra.mxu0 0.0
    %334 = vmatprep.subr.mxu0 0.0
    %335 = vmatpush1.msra.mxu0 0.0
    %336 = vmatprep.mubr.f32.mxu0 0.0
    %337 = vmatmul.mubr.f32.gmra.mrb[0].mxu0 %v250
    %v338 = vpop.f32.mrb[0].mxu0
    %v339 = vadd.f32 %v271, %v338
    %v340 = vpop.f32.mrb[0].mxu0
    %341 = vdwg.mxu0
    %342 = vst [vmem:[#allocation10] sm:$0xff] %v339
    // Predicated region
    $region38: #{tpu_custom_call.1} parent=1 // pred_check
      _
    $region39: #{tpu_custom_call.1} parent=1 // pred_check_branch
      %344 = sbr.rel (0) target = $region41
    $region40: #{tpu_custom_call.1} parent=1 // pred_region
      %s346 = ssub.s32 128, 128
      %347 = vsyncadd [#allocation4], %s346
      %s349 = sshll.u32 [#allocation10], 4
      %s350 = int_to_ptr.vmem [resolvable:$true] %s349
      %352 = dma.vmem_to_hbm [thread:$0]  %s350, 128, %s5, [#allocation4]
    $region41: #{tpu_custom_call.1} parent=1 // pred_fallthru
      _
    // Predicated region
    $region42: #{tpu_custom_call.1} parent=1 // pred_check
      _
    $region43: #{tpu_custom_call.1} parent=1 // pred_check_branch
      %354 = sbr.rel (0) target = $region45
    $region44: #{tpu_custom_call.1} parent=1 // pred_region
      %355 = dma.done [#allocation4], 128
    $region45: #{tpu_custom_call.1} parent=1 // pred_fallthru
      _
    %356 = vsyncpa [#allocation3], 1
    %357 = vsyncpa [#allocation6], 1
    %358 = vsyncpa [#allocation9], 1
    %359 = vsyncpa [#allocation4], 1

</llo_original>
